<compile_context>
chip_gen: v6e
topology: v6e:2x2x1
jax: 0.10.0
libtpu: 0.0.40
codegen_flags: <defaults>
</compile_context>

<pallas_src>
import math

import jax
import jax.numpy as jnp
from jax.experimental import pallas as pl
from jax.experimental.pallas import tpu as pltpu


# ------------------------------ kernels -----------------------------------

def _drop_path_kernel(x_ref, s_ref, o_ref):
    # x_ref: (tn, tf) activations; s_ref: (tn, 1) f32 per-row scale.
    x = x_ref[...].astype(jnp.float32)
    o_ref[...] = (x * s_ref[...]).astype(o_ref.dtype)


def _drop_path_residual_kernel(x_ref, r_ref, s_ref, o_ref):
    # Fused residual add: o = r + x * scale  (one combined pass over HBM).
    x = x_ref[...].astype(jnp.float32)
    r = r_ref[...].astype(jnp.float32)
    o_ref[...] = (r + x * s_ref[...]).astype(o_ref.dtype)


# ------------------------- tiling / chip config ----------------------------

def _sublane_multiple(dtype):
    """Rows per vreg sublane group: 8 for f32, 16 for bf16/f16, 32 for 8-bit."""
    bits = jnp.dtype(dtype).itemsize * 8
    return max(8, 256 // bits)


def _chip_config():
    kind = ""
    try:
        kind = jax.devices()[0].device_kind.lower()
    except Exception:  # pragma: no cover - defensive only
        pass
    if "v5" in kind or "v6" in kind:
        # 128 MiB physical VMEM (16/32 MiB default scoped): big tiles, raised
        # scoped limit, 3-deep input pipeline; single TensorCore per chip.
        return {"tile_bytes": 8 << 20, "vmem_limit": 64 << 20,
                "depth": 3, "min_blocks": 1}
    # v7x (64 MiB VMEM, 2 TensorCores) and anything unknown: conservative
    # 4 MiB tiles, default scoped VMEM, double-buffering, >= 2 parallel blocks.
    return {"tile_bytes": 4 << 20, "vmem_limit": None,
            "depth": 2, "min_blocks": 2}


def _fold_rows(N, F, sub_mult):
    """Return (T, D) with F == T*D and D % 128 == 0, folding rows when the
    batch is too small to fill the sublanes.  T == 1 means no folding."""
    if N >= sub_mult or F < 128 or F % 128 != 0:
        return 1, F
    m = F // 128
    best = 1  # fall back to maximal folding (D = 128) if nothing reaches sub_mult
    for d in range(m, 0, -1):
        if m % d == 0 and N * (m // d) >= sub_mult:
            best = d
            break
    return m // best, 128 * best


def _tile_sizes(R, C, itemsize, sub_mult, tile_bytes, min_blocks):
    # Lane tile: full lane-dense width (128-multiple) when possible.
    tf = (C // 128) * 128 if C >= 128 else C
    # Row tile: spend the byte budget on rows, rounded to the sublane multiple.
    rows_budget = max(1, tile_bytes // max(1, tf * itemsize))
    if R >= sub_mult:
        tn = min((R // sub_mult) * sub_mult,
                 max(sub_mult, (rows_budget // sub_mult) * sub_mult))
    else:
        tn = R
    # If even the minimum row tile at full lane width overflows the budget,
    # trim the lane tile (keeping it a 128-multiple).
    if tf > 128 and tn * tf * itemsize > tile_bytes:
        tf = max(128, ((tile_bytes // max(1, tn * itemsize)) // 128) * 128)
    # Multi-TensorCore chips want >= 2 parallel blocks so both TCs are fed.
    if pl.cdiv(R, tn) * pl.cdiv(C, tf) < min_blocks:
        if tn >= 2 * sub_mult:
            tn = ((tn // 2) // sub_mult) * sub_mult
        elif tf >= 256:
            tf = ((tf // 2) // 128) * 128
    return tn, tf


def _data_spec(tn, tf, depth):
    """BlockSpec for a streamed (tn, tf) operand, with optional deeper pipeline."""
    if depth and depth > 2:
        try:
            return pl.BlockSpec((tn, tf), lambda i, j: (i, j),
                                pipeline_mode=pl.Buffered(depth))
        except TypeError:  # older jax without pipeline_mode: plain double-buffer
            pass
    return pl.BlockSpec((tn, tf), lambda i, j: (i, j))


# ------------------------------ pallas call --------------------------------

def _scale_apply(x2, scale_rows, residual2=None):
    """out[r, c] = (residual2[r, c] +) x2[r, c] * scale_rows[r, 0]."""
    R, C = x2.shape
    itemsize = jnp.dtype(x2.dtype).itemsize
    cfg = _chip_config()
    tile_bytes = cfg["tile_bytes"] // (2 if residual2 is not None else 1)
    sub_mult = _sublane_multiple(x2.dtype)
    tn, tf = _tile_sizes(R, C, itemsize, sub_mult, tile_bytes, cfg["min_blocks"])
    grid = (pl.cdiv(R, tn), pl.cdiv(C, tf))

    scale_spec = pl.BlockSpec((tn, 1), lambda i, j: (i, 0))
    out_spec = pl.BlockSpec((tn, tf), lambda i, j: (i, j))

    if residual2 is None:
        kernel = _drop_path_kernel
        operands = (x2, scale_rows)
        in_specs = [_data_spec(tn, tf, cfg["depth"]), scale_spec]
        flops = R * C
        bytes_accessed = 2 * R * C * itemsize + R * 4
    else:
        kernel = _drop_path_residual_kernel
        operands = (x2, residual2, scale_rows)
        in_specs = [_data_spec(tn, tf, cfg["depth"]),
                    _data_spec(tn, tf, cfg["depth"]),
                    scale_spec]
        flops = 2 * R * C
        bytes_accessed = 3 * R * C * itemsize + R * 4

    return pl.pallas_call(
        kernel,
        out_shape=jax.ShapeDtypeStruct((R, C), x2.dtype),
        grid_spec=pltpu.PrefetchScalarGridSpec(
            num_scalar_prefetch=0,
            grid=grid,
            in_specs=in_specs,
            out_specs=out_spec,
        ),
        compiler_params=pltpu.CompilerParams(
            dimension_semantics=("parallel", "parallel"),
            vmem_limit_bytes=cfg["vmem_limit"],
        ),
        cost_estimate=pl.CostEstimate(
            flops=flops, transcendentals=0, bytes_accessed=bytes_accessed),
    )(*operands)


# ------------------------------ public API ---------------------------------

def drop_path(x, drop_prob: float = 0.0, *, training: bool = False, key=None,
              residual=None):
    """Pallas DropPath; matches torch drop_path(x, drop_prob, training).

    If `residual` (same shape as x) is given, returns residual + drop_path(x)
    fused in a single pass over HBM (the usual use inside a residual block).
    Default residual=None keeps the module's exact forward semantics.
    """
    if drop_prob == 0.0 or not training:
        return x if residual is None else residual + x
    if key is None:
        raise ValueError("drop_path in training mode requires a PRNG key")

    keep_prob = 1.0 - drop_prob
    N = x.shape[0]
    F = math.prod(x.shape[1:])

    # Per-sample Bernoulli(keep_prob) mask with the same construction as the
    # torch code (keep_prob + U[0,1), floored), drawn in x.dtype so the
    # keep/drop decision matches a same-dtype run.  The fused scale itself is
    # kept in f32 so low-precision dtypes don't round 1/keep_prob per sample.
    u = jax.random.uniform(key, (N,) + (1,) * (x.ndim - 1), dtype=x.dtype)
    mask = jnp.floor(keep_prob + u).reshape(N, 1).astype(jnp.float32)
    scale = mask / jnp.float32(keep_prob)               # (N, 1): 0 or 1/keep

    # Lane-dense layout: flatten non-batch dims; if the batch is tiny and F is
    # a 128-multiple, fold rows so sublanes are fully used and stores stay
    # full-lane unmasked vst.
    sub_mult = _sublane_multiple(x.dtype)
    T, D = _fold_rows(N, F, sub_mult)
    rows = N * T
    x2 = x.reshape(rows, D)
    scale_rows = scale if T == 1 else jnp.repeat(scale, T, axis=0)
    res2 = None if residual is None else residual.reshape(rows, D)

    out2 = _scale_apply(x2, scale_rows, res2)
    return out2.reshape(x.shape)


def _reference(x, drop_prob, training, key):
    """Pure-JAX reference mirroring the PyTorch drop_path exactly."""
    if drop_prob == 0.0 or not training:
        return x
    keep_prob = 1.0 - drop_prob
    shape = (x.shape[0],) + (1,) * (x.ndim - 1)
    u = jax.random.uniform(key, shape, dtype=x.dtype)
    random_tensor = jnp.floor(keep_prob + u)
    return x / keep_prob * random_tensor


if __name__ == "__main__":
    root = jax.random.PRNGKey(0)
    kx, kd, kx2, kd2, kx3, kd3, kr = jax.random.split(root, 7)

    # 1) Small shape consistent with DropPath in the ViT3D blocks:
    #    x is (batch, tokens, embed_dim).
    batch, seq, hidden = 2, 8, 32
    x = jax.random.normal(kx, (batch, seq, hidden), dtype=jnp.float32)
    out = jax.block_until_ready(drop_path(x, 0.25, training=True, key=kd))
    ref = _reference(x, 0.25, True, kd)
    assert out.shape == x.shape, out.shape
    assert jnp.allclose(out, ref, atol=1e-6, rtol=1e-6), \
        float(jnp.max(jnp.abs(out - ref)))

    # 2) Larger f32 shape exercising the tiled (rows x lanes) grid.
    x_big = jax.random.normal(kx2, (16, 64, 128), dtype=jnp.float32)
    out_big = jax.block_until_ready(drop_path(x_big, 0.5, training=True, key=kd2))
    ref_big = _reference(x_big, 0.5, True, kd2)
    assert jnp.allclose(out_big, ref_big, atol=1e-6, rtol=1e-6), \
        float(jnp.max(jnp.abs(out_big - ref_big)))

    # 3) bf16 path: dtype-aware sublane tiling + tiny-batch row folding.
    x_bf = jax.random.normal(kx3, (4, 16, 64), dtype=jnp.bfloat16)
    out_bf = jax.block_until_ready(drop_path(x_bf, 0.3, training=True, key=kd3))
    ref_bf = _reference(x_bf, 0.3, True, kd3)
    assert jnp.allclose(out_bf.astype(jnp.float32), ref_bf.astype(jnp.float32),
                        atol=2e-2, rtol=2e-2), \
        float(jnp.max(jnp.abs(out_bf.astype(jnp.float32) -
                              ref_bf.astype(jnp.float32))))

    # 4) Fused residual add (one combined pass over HBM).
    res = jax.random.normal(kr, x_big.shape, dtype=jnp.float32)
    out_fused = jax.block_until_ready(
        drop_path(x_big, 0.5, training=True, key=kd2, residual=res))
    ref_fused = res + _reference(x_big, 0.5, True, kd2)
    assert jnp.allclose(out_fused, ref_fused, atol=1e-5, rtol=1e-5), \
        float(jnp.max(jnp.abs(out_fused - ref_fused)))

    # 5) Eval / drop_prob == 0 path is the identity, exactly like the module.
    out_eval = drop_path(x, 0.25, training=False)
    assert jnp.array_equal(out_eval, x)

    print("KERNEL_OK")
</pallas_src>

<mosaic_0001>
module attributes {stable_mosaic.version = 11 : i64} {
  func.func @_drop_path_kernel(%arg0: i32, %arg1: i32, %arg2: memref<4x128xf32, #tpu.memory_space<vmem>>, %arg3: memref<4x1xf32, #tpu.memory_space<vmem>>, %arg4: memref<4x128xf32, #tpu.memory_space<vmem>>) attributes {dimension_semantics = [#tpu.dimension_semantics<parallel>, #tpu.dimension_semantics<parallel>], iteration_bounds = array<i64: 1, 1>, scalar_prefetch = 0 : i64, scratch_operands = 0 : i64, tpu.core_type = #tpu.core_type<tc>, window_params = [{transform_indices = @transform_0, window_bounds = array<i64: 4, 128>}, {transform_indices = @transform_1, window_bounds = array<i64: 4, 1>}, {transform_indices = @transform_2, window_bounds = array<i64: 4, 128>}]} {
    %c0 = arith.constant 0 : index
    %c0_0 = arith.constant 0 : index
    %0 = vector.load %arg2[%c0, %c0_0] : memref<4x128xf32, #tpu.memory_space<vmem>>, vector<4x128xf32>
    %c0_1 = arith.constant 0 : index
    %c0_2 = arith.constant 0 : index
    %1 = vector.load %arg3[%c0_1, %c0_2] : memref<4x1xf32, #tpu.memory_space<vmem>>, vector<4x1xf32>
    %2 = vector.broadcast %1 : vector<4x1xf32> to vector<4x128xf32>
    %3 = arith.mulf %0, %2 : vector<4x128xf32>
    %c0_3 = arith.constant 0 : index
    %c0_4 = arith.constant 0 : index
    %4 = vector.load %arg4[%c0_3, %c0_4] : memref<4x128xf32, #tpu.memory_space<vmem>>, vector<4x128xf32>
    tpu.vector_store %arg4[%c0_3, %c0_4], %3 {strides = array<i32>} : memref<4x128xf32, #tpu.memory_space<vmem>>, vector<4x128xf32>,
    return
  }
  func.func @transform_0(%arg0: i32, %arg1: i32) -> (i32, i32) {
    %c0_i32 = arith.constant 0 : i32
    return %arg0, %arg1 : i32, i32
  }
  func.func @transform_1(%arg0: i32, %arg1: i32) -> (i32, i32) {
    %c0_i32 = arith.constant 0 : i32
    %c0_i32_0 = arith.constant 0 : i32
    return %arg0, %c0_i32 : i32, i32
  }
  func.func @transform_2(%arg0: i32, %arg1: i32) -> (i32, i32) {
    %c0_i32 = arith.constant 0 : i32
    return %arg0, %arg1 : i32, i32
  }
}

</mosaic_0001>

<llo_original>
// kernel: tpu_custom_call.1
$region0: #{tpu_custom_call.1}
  #allocation0 [shape = 'u32[]', space=smem, size = 0x4, offset = 0x4, fixed_abs, tag = 'smem constant byte address 0x4 - core index']
  #allocation1 [shape = 'u32[144,128]{1,0:T(1,128)}', space=vmem, size = 0x12000, scoped, tag = 'internal scratch']
  %s0 = inlined_call_operand.vmem [shape: f32[4,128], index: 0, kind: input, shape index: {}]
  %s1 = inlined_call_operand.vmem [shape: f32[4,1], index: 1, kind: input, shape index: {}]
  %s2 = inlined_call_operand.hbm [shape: f32[4,128], index: 2, kind: output, shape index: {}]
  %s3 = sld [smem:[#allocation0]]
  $region18: #{tpu_custom_call.1} parent=0
    _
  %s5 = ssub.s32 1, %s3
  %s6 = scalar_select 0, %s5, %s3
  $region1: #{tpu_custom_call.1} parent=0
    #allocation2 [shape = 'u8[2048]{0}', space=vmem, size = 0x800, scoped, tag = 'output window, operand 0, single buffered']
    #allocation3 [shape = 's32[1]{0}', space=sflag, size = 0x4, scoped, tag = 'scoped memory for tpu_custom_call.1']
    %7 = vsyncpa [#allocation3], 0
    // Predicated region
    $region2: #{tpu_custom_call.1} parent=1 // pred_check
      _
    $region3: #{tpu_custom_call.1} parent=1 // pred_check_branch
      %9 = sbr.rel (0) target = $region5
    $region4: #{tpu_custom_call.1} parent=1 // pred_region
      _
    $region5: #{tpu_custom_call.1} parent=1 // pred_fallthru
      _
    // Predicated region
    $region6: #{tpu_custom_call.1} parent=1 // pred_check
      _
    $region7: #{tpu_custom_call.1} parent=1 // pred_check_branch
      %11 = sbr.rel (0) target = $region9
    $region8: #{tpu_custom_call.1} parent=1 // pred_region
      _
    $region9: #{tpu_custom_call.1} parent=1 // pred_fallthru
      _
    %v12 = vld [vmem:[%s0] sm:$0xf]
    %v13 = vld [vmem:[%s1] sm:$0xf]
    %15 = vset.pattern.permute.xlu0 0
    %16 = vperm.xlu0 %15, %v13
    %v17 = vpop.permute.xlu0 %16
    %v19 = vmul.f32 %v12, %v17
    %20 = vst [vmem:[#allocation2] sm:$0xf] %v19
    // Predicated region
    $region10: #{tpu_custom_call.1} parent=1 // pred_check
      _
    $region11: #{tpu_custom_call.1} parent=1 // pred_check_branch
      %22 = sbr.rel (0) target = $region13
    $region12: #{tpu_custom_call.1} parent=1 // pred_region
      %s24 = ssub.s32 64, 64
      %25 = vsyncadd [#allocation3], %s24
      %s27 = sshll.u32 [#allocation2], 4
      %s28 = int_to_ptr.vmem [resolvable:$true] %s27
      %30 = dma.vmem_to_hbm [thread:$0]  %s28, 64, %s2, [#allocation3]
    $region13: #{tpu_custom_call.1} parent=1 // pred_fallthru
      _
    // Predicated region
    $region14: #{tpu_custom_call.1} parent=1 // pred_check
      _
    $region15: #{tpu_custom_call.1} parent=1 // pred_check_branch
      %32 = sbr.rel (0) target = $region17
    $region16: #{tpu_custom_call.1} parent=1 // pred_region
      %33 = dma.done [#allocation3], 64
    $region17: #{tpu_custom_call.1} parent=1 // pred_fallthru
      _
    %34 = vsyncpa [#allocation3], 1

</llo_original>
